<compile_context>
chip_gen: v6e
topology: v6e:2x2x1
jax: 0.10.0
libtpu: 0.0.40
codegen_flags: <defaults>
</compile_context>

<pallas_src>
import functools

import jax
import jax.numpy as jnp
from jax import lax
from jax.experimental import pallas as pl
from jax.experimental.pallas import tpu as pltpu

LEAK = 0.2  # LeakyReLU negative slope


def _round_up(a, b):
    return (a + b - 1) // b * b


def _leaky(t):
    return jnp.where(t > 0, t, LEAK * t)


# ---------------------------------------------------------------------------
# Fused kernel: LeakyReLU -> Conv2d(k4,s2,p1) -> LeakyReLU -> ConvT(k4,s2,p1)
#
#  Down: the stride-2 4x4 conv is a sum over 4 input phases of stride-1 2x2
#  convs; each tap is a contiguous flat-offset slice of the phase slab
#  (kn2row), assembled in VMEM and fed to one MXU matmul.  The slab rows use
#  width Wrow = Wo+2 with a top/left zero border, so the GEMM output lands
#  *directly* in the zero-padded layout the up path needs (after masking the
#  border/garbage positions to zero).
#
#  Up: stride-2 sub-pixel decomposition -> four 2x2 stride-1 convs (one per
#  output phase), each one MXU matmul on slices of the in-VMEM intermediate.
# ---------------------------------------------------------------------------
def _unet_inner_fused_kernel(p_ref, wd_ref, wu_ref, mask_ref, o_ref, *,
                             wrow, mout_d, mout_u):
    # p_ref:    (1, 4, C_in, MP)        bf16  phase-decomposed, padded input slab
    # wd_ref:   (C_mid, 16*C_in)        bf16  reorganized Conv2d weights
    # wu_ref:   (4, C_out, 4*C_mid)     bf16  per-output-phase ConvT sub-kernels
    # mask_ref: (1, MOUT_D)             f32   1 on interior of padded d, else 0
    # o_ref:    (1, 4, C_out, MOUT_U)   f32   per-batch, per-phase up outputs

    # ---- down: LeakyReLU + in-VMEM kn2row im2col + one MXU matmul ----------
    cols = []
    for f in range(4):                       # input phase (ph, pw)
        t = _leaky(p_ref[0, f])              # LeakyReLU once per loaded element
        for q in range(4):                   # tap (qh, qw) of the 2x2 sub-kernel
            qh, qw = divmod(q, 2)
            s = qh * wrow + qw
            cols.append(t[:, s:s + mout_d])
    patches = jnp.concatenate(cols, axis=0)                    # (16*C_in, MOUT_D)
    d = jnp.dot(wd_ref[...], patches,
                preferred_element_type=jnp.float32)            # (C_mid, MOUT_D) f32
    # d[:, r*wrow + s] == down-conv output at (r-1, s-1); borders/tail garbage.

    # ---- inner activation stays in VMEM: LeakyReLU + zero the pad/garbage --
    t_up = (_leaky(d) * mask_ref[...]).astype(jnp.bfloat16)    # padded-d layout

    # ---- up: sub-pixel ConvTranspose; 9 distinct shifts computed once ------
    shifted = {}
    for dr in range(3):
        for dc in range(3):
            s = dr * wrow + dc
            shifted[(dr, dc)] = t_up[:, s:s + mout_u]
    for r in range(4):                       # output sub-pixel phase (rh, rw)
        rh, rw = divmod(r, 2)
        cols = [shifted[(rh + qh, rw + qw)]
                for qh in range(2) for qw in range(2)]
        patches_r = jnp.concatenate(cols, axis=0)              # (4*C_mid, MOUT_U)
        o_ref[0, r] = jnp.dot(wu_ref[r], patches_r,
                              preferred_element_type=jnp.float32)


def unet_innermost_forward(x, w_down, w_up):
    """UnetSkipConnectionBlock (innermost) forward, NCHW in/out (f32)."""
    N, C, H, W = x.shape
    C_mid = w_down.shape[0]          # inner_nc
    C_out = w_up.shape[1]            # outer_nc
    assert w_down.shape == (C_mid, C, 4, 4)
    assert w_up.shape == (C_mid, C_out, 4, 4)
    assert H % 2 == 0 and W % 2 == 0, (H, W)
    Ho, Wo = H // 2, W // 2
    Hph, Wph = (H + 2) // 2, (W + 2) // 2       # per-phase extent (= Ho+1, Wo+1)
    Wrow = Wo + 2                               # unified flat row width (padded d)

    # Flat-length budget (kn2row: shifted slices must stay in-bounds).
    mout_u = _round_up(Ho * Wrow, 128)                          # up GEMM lane width
    mout_d = _round_up(max((Ho + 2) * Wrow, mout_u + 2 * Wrow + 2), 128)
    mp = _round_up(mout_d + Wrow + 1, 128)                      # input slab length

    # space-to-depth + embed at (row+1, col+1) inside rows of width Wrow:
    #   slab[n, ph*2+pw, c, (a+1)*Wrow + (b+1)] = xpad[n, c, 2a+ph, 2b+pw]
    xp = jnp.pad(x, ((0, 0), (0, 0), (1, 1), (1, 1)))
    slab = xp.reshape(N, C, Hph, 2, Wph, 2).transpose(0, 3, 5, 1, 2, 4)
    slab = slab.reshape(N, 4, C, Hph, Wph)
    slab = jnp.pad(slab, ((0, 0), (0, 0), (0, 0), (1, 0), (1, Wrow - 1 - Wph)))
    slab = slab.reshape(N, 4, C, (Hph + 1) * Wrow)
    slab = jnp.pad(slab, ((0, 0), (0, 0), (0, 0), (0, mp - (Hph + 1) * Wrow)))
    slab = slab.astype(jnp.bfloat16)            # bf16 activations -> half the DMA

    # Conv2d weights: Wd[o, c, 2qh+ph, 2qw+pw] -> wd[o, ((ph*2+pw)*4 + qh*2+qw)*C + c]
    wd = (w_down.reshape(C_mid, C, 2, 2, 2, 2)   # (o, c, qh, ph, qw, pw)
          .transpose(0, 3, 5, 2, 4, 1)           # (o, ph, pw, qh, qw, c)
          .reshape(C_mid, 16 * C)
          .astype(jnp.bfloat16))

    # ConvT weights per output phase (rh,rw), tap (qh,qw): Wu[c,o,3-rh-2qh,3-rw-2qw]
    wu = jnp.stack([
        jnp.stack([w_up[:, :, 3 - rh - 2 * qh, 3 - rw - 2 * qw].T
                   for qh in range(2) for qw in range(2)], axis=0)   # (4, C_out, C_mid)
        for rh in range(2) for rw in range(2)], axis=0)              # (4, 4, C_out, C_mid)
    wu = wu.transpose(0, 2, 1, 3).reshape(4, C_out, 4 * C_mid).astype(jnp.bfloat16)

    # 0/1 mask selecting the interior of the padded-d layout (zeroes the pad
    # ring and the kn2row garbage/tail positions).
    idx = jnp.arange(mout_d, dtype=jnp.int32)
    rr, ss = idx // Wrow, idx % Wrow
    mask = (((rr >= 1) & (rr <= Ho) & (ss >= 1) & (ss <= Wo))
            .astype(jnp.float32)[None, :])

    kernel = functools.partial(_unet_inner_fused_kernel,
                               wrow=Wrow, mout_d=mout_d, mout_u=mout_u)
    out = pl.pallas_call(
        kernel,
        out_shape=jax.ShapeDtypeStruct((N, 4, C_out, mout_u), jnp.float32),
        grid=(N,),
        in_specs=[
            pl.BlockSpec((1, 4, C, mp), lambda n: (n, 0, 0, 0)),
            pl.BlockSpec((C_mid, 16 * C), lambda n: (0, 0)),
            pl.BlockSpec((4, C_out, 4 * C_mid), lambda n: (0, 0, 0)),
            pl.BlockSpec((1, mout_d), lambda n: (0, 0)),
        ],
        out_specs=pl.BlockSpec((1, 4, C_out, mout_u), lambda n: (n, 0, 0, 0)),
        compiler_params=pltpu.CompilerParams(dimension_semantics=("parallel",)),
    )(slab, wd, wu, mask)

    # crop kn2row garbage columns, interleave the 4 sub-pixel phases, skip-concat
    u = out[..., :Ho * Wrow].reshape(N, 2, 2, C_out, Ho, Wrow)[..., :Wo]
    u = u.transpose(0, 3, 4, 1, 5, 2).reshape(N, C_out, H, W)
    return jnp.concatenate([x, u], axis=1)


# ---------------------------------------------------------------------------
# Pure-JAX reference (XLA convs, f32) for correctness checking.
# ---------------------------------------------------------------------------
def unet_innermost_reference(x, w_down, w_up):
    lrelu = lambda t: jnp.where(t > 0, t, LEAK * t)
    d = lax.conv_general_dilated(
        lrelu(x), w_down, window_strides=(2, 2), padding=((1, 1), (1, 1)),
        dimension_numbers=("NCHW", "OIHW", "NCHW"))
    w_conv = jnp.flip(w_up, axis=(2, 3)).transpose(1, 0, 2, 3)
    u = lax.conv_general_dilated(
        lrelu(d), w_conv, window_strides=(1, 1), padding=((2, 2), (2, 2)),
        lhs_dilation=(2, 2), dimension_numbers=("NCHW", "OIHW", "NCHW"))
    return jnp.concatenate([x, u], axis=1)


if __name__ == "__main__":
    # Shapes consistent with the module:
    #   outer_nc=4, inner_nc=8, input_nc=None -> input_nc = outer_nc = 4
    N, H, W = 2, 16, 16
    outer_nc, inner_nc, input_nc = 4, 8, 4

    key = jax.random.PRNGKey(0)
    kx, kd, ku = jax.random.split(key, 3)
    x = jax.random.normal(kx, (N, input_nc, H, W), dtype=jnp.float32)
    # Conv2d weight: [out=inner_nc, in=input_nc, 4, 4]; bias=False
    w_down = 0.1 * jax.random.normal(kd, (inner_nc, input_nc, 4, 4), dtype=jnp.float32)
    # ConvTranspose2d weight: [in=inner_nc, out=outer_nc, 4, 4]; bias=False
    w_up = 0.1 * jax.random.normal(ku, (inner_nc, outer_nc, 4, 4), dtype=jnp.float32)

    out = jax.jit(unet_innermost_forward)(x, w_down, w_up)
    out = jax.block_until_ready(out)
    assert out.shape == (N, input_nc + outer_nc, H, W), out.shape

    ref = jax.block_until_ready(unet_innermost_reference(x, w_down, w_up))
    # bf16 activations/MXU operands vs f32 reference -> loose-but-meaningful tol.
    assert jnp.allclose(out, ref, rtol=5e-2, atol=5e-2), float(jnp.abs(out - ref).max())

    print("KERNEL_OK")
</pallas_src>

<mosaic_0001>
module attributes {stable_mosaic.version = 11 : i64} {
  func.func @_unet_inner_fused_kernel(%arg0: i32, %arg1: memref<1x4x4x384xbf16, #tpu.memory_space<vmem>>, %arg2: memref<8x64xbf16, #tpu.memory_space<vmem>>, %arg3: memref<4x4x32xbf16, #tpu.memory_space<vmem>>, %arg4: memref<1x256xf32, #tpu.memory_space<vmem>>, %arg5: memref<1x4x4x128xf32, #tpu.memory_space<vmem>>) attributes {dimension_semantics = [#tpu.dimension_semantics<parallel>], iteration_bounds = array<i64: 2>, scalar_prefetch = 0 : i64, scratch_operands = 0 : i64, tpu.core_type = #tpu.core_type<tc>, window_params = [{transform_indices = @transform_0, window_bounds = array<i64: 1, 4, 4, 384>}, {pipeline_mode = #tpu.pipeline_mode<synchronous>, transform_indices = @transform_1, window_bounds = array<i64: 8, 64>}, {pipeline_mode = #tpu.pipeline_mode<synchronous>, transform_indices = @transform_2, window_bounds = array<i64: 4, 4, 32>}, {pipeline_mode = #tpu.pipeline_mode<synchronous>, transform_indices = @transform_3, window_bounds = array<i64: 1, 256>}, {transform_indices = @transform_4, window_bounds = array<i64: 1, 4, 4, 128>}]} {
    %c0 = arith.constant 0 : index
    %c0_0 = arith.constant 0 : index
    %c0_1 = arith.constant 0 : index
    %c0_2 = arith.constant 0 : index
    %0 = vector.load %arg1[%c0, %c0_0, %c0_1, %c0_2] : memref<1x4x4x384xbf16, #tpu.memory_space<vmem>>, vector<1x1x4x384xbf16>
    %1 = vector.shape_cast %0 : vector<1x1x4x384xbf16> to vector<4x384xbf16>
    %cst = arith.constant 0.000000e+00 : bf16
    %2 = vector.broadcast %cst : bf16 to vector<4x384xbf16>
    %3 = arith.cmpf ogt, %1, %2 : vector<4x384xbf16>
    %cst_3 = arith.constant 2.001950e-01 : bf16
    %4 = vector.broadcast %cst_3 : bf16 to vector<4x384xbf16>
    %5 = arith.mulf %4, %1 : vector<4x384xbf16>
    %6 = arith.select %3, %1, %5 : vector<4x384xi1>, vector<4x384xbf16>
    %7 = vector.extract_strided_slice %6 {offsets = [0, 0], sizes = [4, 256], strides = [1, 1]} : vector<4x384xbf16> to vector<4x256xbf16>
    %8 = vector.extract_strided_slice %6 {offsets = [0, 1], sizes = [4, 256], strides = [1, 1]} : vector<4x384xbf16> to vector<4x256xbf16>
    %9 = vector.extract_strided_slice %6 {offsets = [0, 10], sizes = [4, 256], strides = [1, 1]} : vector<4x384xbf16> to vector<4x256xbf16>
    %10 = vector.extract_strided_slice %6 {offsets = [0, 11], sizes = [4, 256], strides = [1, 1]} : vector<4x384xbf16> to vector<4x256xbf16>
    %c0_4 = arith.constant 0 : index
    %c1 = arith.constant 1 : index
    %c0_5 = arith.constant 0 : index
    %c0_6 = arith.constant 0 : index
    %11 = vector.load %arg1[%c0_4, %c1, %c0_5, %c0_6] : memref<1x4x4x384xbf16, #tpu.memory_space<vmem>>, vector<1x1x4x384xbf16>
    %12 = vector.shape_cast %11 : vector<1x1x4x384xbf16> to vector<4x384xbf16>
    %cst_7 = arith.constant 0.000000e+00 : bf16
    %13 = vector.broadcast %cst_7 : bf16 to vector<4x384xbf16>
    %14 = arith.cmpf ogt, %12, %13 : vector<4x384xbf16>
    %cst_8 = arith.constant 2.001950e-01 : bf16
    %15 = vector.broadcast %cst_8 : bf16 to vector<4x384xbf16>
    %16 = arith.mulf %15, %12 : vector<4x384xbf16>
    %17 = arith.select %14, %12, %16 : vector<4x384xi1>, vector<4x384xbf16>
    %18 = vector.extract_strided_slice %17 {offsets = [0, 0], sizes = [4, 256], strides = [1, 1]} : vector<4x384xbf16> to vector<4x256xbf16>
    %19 = vector.extract_strided_slice %17 {offsets = [0, 1], sizes = [4, 256], strides = [1, 1]} : vector<4x384xbf16> to vector<4x256xbf16>
    %20 = vector.extract_strided_slice %17 {offsets = [0, 10], sizes = [4, 256], strides = [1, 1]} : vector<4x384xbf16> to vector<4x256xbf16>
    %21 = vector.extract_strided_slice %17 {offsets = [0, 11], sizes = [4, 256], strides = [1, 1]} : vector<4x384xbf16> to vector<4x256xbf16>
    %c0_9 = arith.constant 0 : index
    %c2 = arith.constant 2 : index
    %c0_10 = arith.constant 0 : index
    %c0_11 = arith.constant 0 : index
    %22 = vector.load %arg1[%c0_9, %c2, %c0_10, %c0_11] : memref<1x4x4x384xbf16, #tpu.memory_space<vmem>>, vector<1x1x4x384xbf16>
    %23 = vector.shape_cast %22 : vector<1x1x4x384xbf16> to vector<4x384xbf16>
    %cst_12 = arith.constant 0.000000e+00 : bf16
    %24 = vector.broadcast %cst_12 : bf16 to vector<4x384xbf16>
    %25 = arith.cmpf ogt, %23, %24 : vector<4x384xbf16>
    %cst_13 = arith.constant 2.001950e-01 : bf16
    %26 = vector.broadcast %cst_13 : bf16 to vector<4x384xbf16>
    %27 = arith.mulf %26, %23 : vector<4x384xbf16>
    %28 = arith.select %25, %23, %27 : vector<4x384xi1>, vector<4x384xbf16>
    %29 = vector.extract_strided_slice %28 {offsets = [0, 0], sizes = [4, 256], strides = [1, 1]} : vector<4x384xbf16> to vector<4x256xbf16>
    %30 = vector.extract_strided_slice %28 {offsets = [0, 1], sizes = [4, 256], strides = [1, 1]} : vector<4x384xbf16> to vector<4x256xbf16>
    %31 = vector.extract_strided_slice %28 {offsets = [0, 10], sizes = [4, 256], strides = [1, 1]} : vector<4x384xbf16> to vector<4x256xbf16>
    %32 = vector.extract_strided_slice %28 {offsets = [0, 11], sizes = [4, 256], strides = [1, 1]} : vector<4x384xbf16> to vector<4x256xbf16>
    %c0_14 = arith.constant 0 : index
    %c3 = arith.constant 3 : index
    %c0_15 = arith.constant 0 : index
    %c0_16 = arith.constant 0 : index
    %33 = vector.load %arg1[%c0_14, %c3, %c0_15, %c0_16] : memref<1x4x4x384xbf16, #tpu.memory_space<vmem>>, vector<1x1x4x384xbf16>
    %34 = vector.shape_cast %33 : vector<1x1x4x384xbf16> to vector<4x384xbf16>
    %cst_17 = arith.constant 0.000000e+00 : bf16
    %35 = vector.broadcast %cst_17 : bf16 to vector<4x384xbf16>
    %36 = arith.cmpf ogt, %34, %35 : vector<4x384xbf16>
    %cst_18 = arith.constant 2.001950e-01 : bf16
    %37 = vector.broadcast %cst_18 : bf16 to vector<4x384xbf16>
    %38 = arith.mulf %37, %34 : vector<4x384xbf16>
    %39 = arith.select %36, %34, %38 : vector<4x384xi1>, vector<4x384xbf16>
    %40 = vector.extract_strided_slice %39 {offsets = [0, 0], sizes = [4, 256], strides = [1, 1]} : vector<4x384xbf16> to vector<4x256xbf16>
    %41 = vector.extract_strided_slice %39 {offsets = [0, 1], sizes = [4, 256], strides = [1, 1]} : vector<4x384xbf16> to vector<4x256xbf16>
    %42 = vector.extract_strided_slice %39 {offsets = [0, 10], sizes = [4, 256], strides = [1, 1]} : vector<4x384xbf16> to vector<4x256xbf16>
    %43 = vector.extract_strided_slice %39 {offsets = [0, 11], sizes = [4, 256], strides = [1, 1]} : vector<4x384xbf16> to vector<4x256xbf16>
    %44 = tpu.concatenate %7, %8, %9, %10, %18, %19, %20, %21, %29, %30, %31, %32, %40, %41, %42, %43 in 0 : vector<4x256xbf16>, vector<4x256xbf16>, vector<4x256xbf16>, vector<4x256xbf16>, vector<4x256xbf16>, vector<4x256xbf16>, vector<4x256xbf16>, vector<4x256xbf16>, vector<4x256xbf16>, vector<4x256xbf16>, vector<4x256xbf16>, vector<4x256xbf16>, vector<4x256xbf16>, vector<4x256xbf16>, vector<4x256xbf16>, vector<4x256xbf16> -> vector<64x256xbf16>
    %c0_19 = arith.constant 0 : index
    %c0_20 = arith.constant 0 : index
    %45 = vector.load %arg2[%c0_19, %c0_20] : memref<8x64xbf16, #tpu.memory_space<vmem>>, vector<8x64xbf16>
    %cst_21 = arith.constant dense<0.000000e+00> : vector<8x256xf32>
    %46 = tpu.matmul %45, %44, %cst_21 {dimension_numbers = #tpu.dot_dimension_numbers<[1], [0], [0], [1], [0, 0, 1, 1], [], []>} : vector<8x64xbf16>, vector<64x256xbf16>, vector<8x256xf32> -> vector<8x256xf32>
    %cst_22 = arith.constant 0.000000e+00 : f32
    %47 = vector.broadcast %cst_22 : f32 to vector<8x256xf32>
    %48 = arith.cmpf ogt, %46, %47 : vector<8x256xf32>
    %cst_23 = arith.constant 2.000000e-01 : f32
    %49 = vector.broadcast %cst_23 : f32 to vector<8x256xf32>
    %50 = arith.mulf %49, %46 : vector<8x256xf32>
    %51 = arith.select %48, %46, %50 : vector<8x256xi1>, vector<8x256xf32>
    %c0_24 = arith.constant 0 : index
    %c0_25 = arith.constant 0 : index
    %52 = vector.load %arg4[%c0_24, %c0_25] : memref<1x256xf32, #tpu.memory_space<vmem>>, vector<1x256xf32>
    %53 = vector.broadcast %52 : vector<1x256xf32> to vector<8x256xf32>
    %54 = arith.mulf %51, %53 : vector<8x256xf32>
    %55 = arith.truncf %54 : vector<8x256xf32> to vector<8x256xbf16>
    %56 = vector.extract_strided_slice %55 {offsets = [0, 0], sizes = [8, 128], strides = [1, 1]} : vector<8x256xbf16> to vector<8x128xbf16>
    %57 = vector.extract_strided_slice %55 {offsets = [0, 1], sizes = [8, 128], strides = [1, 1]} : vector<8x256xbf16> to vector<8x128xbf16>
    %58 = vector.extract_strided_slice %55 {offsets = [0, 2], sizes = [8, 128], strides = [1, 1]} : vector<8x256xbf16> to vector<8x128xbf16>
    %59 = vector.extract_strided_slice %55 {offsets = [0, 10], sizes = [8, 128], strides = [1, 1]} : vector<8x256xbf16> to vector<8x128xbf16>
    %60 = vector.extract_strided_slice %55 {offsets = [0, 11], sizes = [8, 128], strides = [1, 1]} : vector<8x256xbf16> to vector<8x128xbf16>
    %61 = vector.extract_strided_slice %55 {offsets = [0, 12], sizes = [8, 128], strides = [1, 1]} : vector<8x256xbf16> to vector<8x128xbf16>
    %62 = vector.extract_strided_slice %55 {offsets = [0, 20], sizes = [8, 128], strides = [1, 1]} : vector<8x256xbf16> to vector<8x128xbf16>
    %63 = vector.extract_strided_slice %55 {offsets = [0, 21], sizes = [8, 128], strides = [1, 1]} : vector<8x256xbf16> to vector<8x128xbf16>
    %64 = vector.extract_strided_slice %55 {offsets = [0, 22], sizes = [8, 128], strides = [1, 1]} : vector<8x256xbf16> to vector<8x128xbf16>
    %65 = tpu.concatenate %56, %57, %59, %60 in 0 : vector<8x128xbf16>, vector<8x128xbf16>, vector<8x128xbf16>, vector<8x128xbf16> -> vector<32x128xbf16>
    %c0_26 = arith.constant 0 : index
    %c0_27 = arith.constant 0 : index
    %c0_28 = arith.constant 0 : index
    %66 = vector.load %arg3[%c0_26, %c0_27, %c0_28] : memref<4x4x32xbf16, #tpu.memory_space<vmem>>, vector<1x4x32xbf16>
    %67 = vector.shape_cast %66 : vector<1x4x32xbf16> to vector<4x32xbf16>
    %cst_29 = arith.constant dense<0.000000e+00> : vector<4x128xf32>
    %68 = tpu.matmul %67, %65, %cst_29 {dimension_numbers = #tpu.dot_dimension_numbers<[1], [0], [0], [1], [0, 0, 1, 1], [], []>} : vector<4x32xbf16>, vector<32x128xbf16>, vector<4x128xf32> -> vector<4x128xf32>
    %c0_30 = arith.constant 0 : index
    %c0_31 = arith.constant 0 : index
    %c0_32 = arith.constant 0 : index
    %c0_33 = arith.constant 0 : index
    %69 = vector.load %arg5[%c0_30, %c0_31, %c0_32, %c0_33] : memref<1x4x4x128xf32, #tpu.memory_space<vmem>>, vector<1x1x4x128xf32>
    %70 = vector.shape_cast %69 : vector<1x1x4x128xf32> to vector<4x128xf32>
    %71 = vector.shape_cast %68 : vector<4x128xf32> to vector<1x1x4x128xf32>
    tpu.vector_store %arg5[%c0_30, %c0_31, %c0_32, %c0_33], %71 {strides = array<i32>} : memref<1x4x4x128xf32, #tpu.memory_space<vmem>>, vector<1x1x4x128xf32>,
    %72 = tpu.concatenate %57, %58, %60, %61 in 0 : vector<8x128xbf16>, vector<8x128xbf16>, vector<8x128xbf16>, vector<8x128xbf16> -> vector<32x128xbf16>
    %c1_34 = arith.constant 1 : index
    %c0_35 = arith.constant 0 : index
    %c0_36 = arith.constant 0 : index
    %73 = vector.load %arg3[%c1_34, %c0_35, %c0_36] : memref<4x4x32xbf16, #tpu.memory_space<vmem>>, vector<1x4x32xbf16>
    %74 = vector.shape_cast %73 : vector<1x4x32xbf16> to vector<4x32xbf16>
    %cst_37 = arith.constant dense<0.000000e+00> : vector<4x128xf32>
    %75 = tpu.matmul %74, %72, %cst_37 {dimension_numbers = #tpu.dot_dimension_numbers<[1], [0], [0], [1], [0, 0, 1, 1], [], []>} : vector<4x32xbf16>, vector<32x128xbf16>, vector<4x128xf32> -> vector<4x128xf32>
    %c0_38 = arith.constant 0 : index
    %c1_39 = arith.constant 1 : index
    %c0_40 = arith.constant 0 : index
    %c0_41 = arith.constant 0 : index
    %76 = vector.load %arg5[%c0_38, %c1_39, %c0_40, %c0_41] : memref<1x4x4x128xf32, #tpu.memory_space<vmem>>, vector<1x1x4x128xf32>
    %77 = vector.shape_cast %76 : vector<1x1x4x128xf32> to vector<4x128xf32>
    %78 = vector.shape_cast %75 : vector<4x128xf32> to vector<1x1x4x128xf32>
    tpu.vector_store %arg5[%c0_38, %c1_39, %c0_40, %c0_41], %78 {strides = array<i32>} : memref<1x4x4x128xf32, #tpu.memory_space<vmem>>, vector<1x1x4x128xf32>,
    %79 = tpu.concatenate %59, %60, %62, %63 in 0 : vector<8x128xbf16>, vector<8x128xbf16>, vector<8x128xbf16>, vector<8x128xbf16> -> vector<32x128xbf16>
    %c2_42 = arith.constant 2 : index
    %c0_43 = arith.constant 0 : index
    %c0_44 = arith.constant 0 : index
    %80 = vector.load %arg3[%c2_42, %c0_43, %c0_44] : memref<4x4x32xbf16, #tpu.memory_space<vmem>>, vector<1x4x32xbf16>
    %81 = vector.shape_cast %80 : vector<1x4x32xbf16> to vector<4x32xbf16>
    %cst_45 = arith.constant dense<0.000000e+00> : vector<4x128xf32>
    %82 = tpu.matmul %81, %79, %cst_45 {dimension_numbers = #tpu.dot_dimension_numbers<[1], [0], [0], [1], [0, 0, 1, 1], [], []>} : vector<4x32xbf16>, vector<32x128xbf16>, vector<4x128xf32> -> vector<4x128xf32>
    %c0_46 = arith.constant 0 : index
    %c2_47 = arith.constant 2 : index
    %c0_48 = arith.constant 0 : index
    %c0_49 = arith.constant 0 : index
    %83 = vector.load %arg5[%c0_46, %c2_47, %c0_48, %c0_49] : memref<1x4x4x128xf32, #tpu.memory_space<vmem>>, vector<1x1x4x128xf32>
    %84 = vector.shape_cast %83 : vector<1x1x4x128xf32> to vector<4x128xf32>
    %85 = vector.shape_cast %82 : vector<4x128xf32> to vector<1x1x4x128xf32>
    tpu.vector_store %arg5[%c0_46, %c2_47, %c0_48, %c0_49], %85 {strides = array<i32>} : memref<1x4x4x128xf32, #tpu.memory_space<vmem>>, vector<1x1x4x128xf32>,
    %86 = tpu.concatenate %60, %61, %63, %64 in 0 : vector<8x128xbf16>, vector<8x128xbf16>, vector<8x128xbf16>, vector<8x128xbf16> -> vector<32x128xbf16>
    %c3_50 = arith.constant 3 : index
    %c0_51 = arith.constant 0 : index
    %c0_52 = arith.constant 0 : index
    %87 = vector.load %arg3[%c3_50, %c0_51, %c0_52] : memref<4x4x32xbf16, #tpu.memory_space<vmem>>, vector<1x4x32xbf16>
    %88 = vector.shape_cast %87 : vector<1x4x32xbf16> to vector<4x32xbf16>
    %cst_53 = arith.constant dense<0.000000e+00> : vector<4x128xf32>
    %89 = tpu.matmul %88, %86, %cst_53 {dimension_numbers = #tpu.dot_dimension_numbers<[1], [0], [0], [1], [0, 0, 1, 1], [], []>} : vector<4x32xbf16>, vector<32x128xbf16>, vector<4x128xf32> -> vector<4x128xf32>
    %c0_54 = arith.constant 0 : index
    %c3_55 = arith.constant 3 : index
    %c0_56 = arith.constant 0 : index
    %c0_57 = arith.constant 0 : index
    %90 = vector.load %arg5[%c0_54, %c3_55, %c0_56, %c0_57] : memref<1x4x4x128xf32, #tpu.memory_space<vmem>>, vector<1x1x4x128xf32>
    %91 = vector.shape_cast %90 : vector<1x1x4x128xf32> to vector<4x128xf32>
    %92 = vector.shape_cast %89 : vector<4x128xf32> to vector<1x1x4x128xf32>
    tpu.vector_store %arg5[%c0_54, %c3_55, %c0_56, %c0_57], %92 {strides = array<i32>} : memref<1x4x4x128xf32, #tpu.memory_space<vmem>>, vector<1x1x4x128xf32>,
    return
  }
  func.func @transform_0(%arg0: i32) -> (i32, i32, i32, i32) {
    %c0_i32 = arith.constant 0 : i32
    %c0_i32_0 = arith.constant 0 : i32
    %c0_i32_1 = arith.constant 0 : i32
    %c0_i32_2 = arith.constant 0 : i32
    return %arg0, %c0_i32, %c0_i32_0, %c0_i32_1 : i32, i32, i32, i32
  }
  func.func @transform_1(%arg0: i32) -> (i32, i32) {
    %c0_i32 = arith.constant 0 : i32
    %c0_i32_0 = arith.constant 0 : i32
    %c0_i32_1 = arith.constant 0 : i32
    return %c0_i32, %c0_i32_0 : i32, i32
  }
  func.func @transform_2(%arg0: i32) -> (i32, i32, i32) {
    %c0_i32 = arith.constant 0 : i32
    %c0_i32_0 = arith.constant 0 : i32
    %c0_i32_1 = arith.constant 0 : i32
    %c0_i32_2 = arith.constant 0 : i32
    return %c0_i32, %c0_i32_0, %c0_i32_1 : i32, i32, i32
  }
  func.func @transform_3(%arg0: i32) -> (i32, i32) {
    %c0_i32 = arith.constant 0 : i32
    %c0_i32_0 = arith.constant 0 : i32
    %c0_i32_1 = arith.constant 0 : i32
    return %c0_i32, %c0_i32_0 : i32, i32
  }
  func.func @transform_4(%arg0: i32) -> (i32, i32, i32, i32) {
    %c0_i32 = arith.constant 0 : i32
    %c0_i32_0 = arith.constant 0 : i32
    %c0_i32_1 = arith.constant 0 : i32
    %c0_i32_2 = arith.constant 0 : i32
    return %arg0, %c0_i32, %c0_i32_0, %c0_i32_1 : i32, i32, i32, i32
  }
}

</mosaic_0001>

<llo_original>
// kernel: unet_innermost_forward.1
$region0: #{unet_innermost_forward.1}
  #allocation0 [shape = 'u32[]', space=smem, size = 0x4, offset = 0x4, fixed_abs, tag = 'smem constant byte address 0x4 - core index']
  #allocation1 [shape = 'u32[144,128]{1,0:T(1,128)}', space=vmem, size = 0x12000, scoped, tag = 'internal scratch']
  %s0 = inlined_call_operand.vmem [shape: bf16[2,4,4,384], index: 0, kind: input, shape index: {}]
  %s1 = inlined_call_operand.vmem [shape: bf16[8,64], index: 1, kind: input, shape index: {}]
  %s2 = inlined_call_operand.vmem [shape: bf16[4,4,32], index: 2, kind: input, shape index: {}]
  %s3 = inlined_call_operand.vmem [shape: f32[1,256], index: 3, kind: input, shape index: {}]
  %s4 = inlined_call_operand.vmem [shape: f32[2,4,4,128], index: 4, kind: output, shape index: {}]
  %s5 = sld [smem:[#allocation0]]
  $region49: #{unet_innermost_forward.1} parent=0
    _
  %s7 = ssub.s32 1, %s5
  %s8 = scalar_select 0, %s7, %s5
  loop: start=0, step=1, limit=4
  $region2: #{unet_innermost_forward.1} parent=0 // loop_pre_header
    _
  $region3: #{unet_innermost_forward.1} parent=0 // loop_header
    %s10 = sphi 0, %s14
    %p11 = scmp.ge.s32.totalorder %s10, 4
    %s20 = sphi 0, %s22
    %s23 = sphi 0, %s20
    %s24 = sphi 0, %s23
    %s40 = sphi 0, %s24
    %s44 = sphi 0, %s44
    %s46 = sphi 0, %s44
    %s47 = sphi 0, %s46
    %s61 = sphi 0, %s47
    %s65 = sphi 0, %s65
    %s67 = sphi 0, %s65
    %s68 = sphi 0, %s67
    %s82 = sphi 0, %s68
    %s86 = sphi 0, %s86
    %s88 = sphi 0, %s86
    %s89 = sphi 0, %s88
    %s103 = sphi 0, %s89
    %s109 = sphi 0, %s111
    %s112 = sphi 0, %s109
    %s113 = sphi 0, %s112
    %s129 = sphi 0, %s113
  $region4: #{unet_innermost_forward.1} parent=0 // loop_header_branch
    %13 = sbr.rel (%p11) target = $region8
  $region5: #{unet_innermost_forward.1} parent=0 // loop_body
    %s15 = ssub.s32 %s10, 1
    %s16 = ssub.s32 %s10, 2
    %s17 = sadd.s32 %s10, 1
    %s18 = ssub.s32 %s10, %s17
    %p19 = scmp.eq.s32.totalorder %s18, 0
    %s21 = sadd.s32 %s20, 1
    %s22 = scalar_select %p19, %s20, %s21
    %p25 = pneg %p19
    %p26 = scmp.eq.s32.totalorder %s10, 1
    %p27 = por %p25, %p26
    %p28 = scmp.ne.s32.totalorder %s20, %s23
    %p29 = scmp.eq.s32.totalorder %s10, 0
    %p30 = por %p28, %p29
    %p31 = scmp.ne.s32.totalorder %s20, %s23
    %p32 = scmp.eq.s32.totalorder %s15, 1
    %p33 = por %p31, %p32
    %p34 = scmp.ne.s32.totalorder %s23, %s24
    %p35 = scmp.eq.s32.totalorder %s15, 0
    %p36 = por %p34, %p35
    %p37 = scmp.ne.s32.totalorder %s23, %s24
    %p38 = scmp.eq.s32.totalorder %s16, 1
    %p39 = por %p37, %p38
    %p41 = scmp.ne.s32.totalorder %s24, %s40
    %p42 = scmp.eq.s32.totalorder %s16, 0
    %p43 = por %p41, %p42
    %s45 = sadd.s32 %s44, 1
    %p48 = scmp.eq.s32.totalorder %s10, 1
    %p49 = scmp.ne.s32.totalorder %s44, %s46
    %p50 = scmp.eq.s32.totalorder %s10, 0
    %p51 = por %p49, %p50
    %p52 = scmp.ne.s32.totalorder %s44, %s46
    %p53 = scmp.eq.s32.totalorder %s15, 1
    %p54 = por %p52, %p53
    %p55 = scmp.ne.s32.totalorder %s46, %s47
    %p56 = scmp.eq.s32.totalorder %s15, 0
    %p57 = por %p55, %p56
    %p58 = scmp.ne.s32.totalorder %s46, %s47
    %p59 = scmp.eq.s32.totalorder %s16, 1
    %p60 = por %p58, %p59
    %p62 = scmp.ne.s32.totalorder %s47, %s61
    %p63 = scmp.eq.s32.totalorder %s16, 0
    %p64 = por %p62, %p63
    %s66 = sadd.s32 %s65, 1
    %p69 = scmp.eq.s32.totalorder %s10, 1
    %p70 = scmp.ne.s32.totalorder %s65, %s67
    %p71 = scmp.eq.s32.totalorder %s10, 0
    %p72 = por %p70, %p71
    %p73 = scmp.ne.s32.totalorder %s65, %s67
    %p74 = scmp.eq.s32.totalorder %s15, 1
    %p75 = por %p73, %p74
    %p76 = scmp.ne.s32.totalorder %s67, %s68
    %p77 = scmp.eq.s32.totalorder %s15, 0
    %p78 = por %p76, %p77
    %p79 = scmp.ne.s32.totalorder %s67, %s68
    %p80 = scmp.eq.s32.totalorder %s16, 1
    %p81 = por %p79, %p80
    %p83 = scmp.ne.s32.totalorder %s68, %s82
    %p84 = scmp.eq.s32.totalorder %s16, 0
    %p85 = por %p83, %p84
    %s87 = sadd.s32 %s86, 1
    %p90 = scmp.eq.s32.totalorder %s10, 1
    %p91 = scmp.ne.s32.totalorder %s86, %s88
    %p92 = scmp.eq.s32.totalorder %s10, 0
    %p93 = por %p91, %p92
    %p94 = scmp.ne.s32.totalorder %s86, %s88
    %p95 = scmp.eq.s32.totalorder %s15, 1
    %p96 = por %p94, %p95
    %p97 = scmp.ne.s32.totalorder %s88, %s89
    %p98 = scmp.eq.s32.totalorder %s15, 0
    %p99 = por %p97, %p98
    %p100 = scmp.ne.s32.totalorder %s88, %s89
    %p101 = scmp.eq.s32.totalorder %s16, 1
    %p102 = por %p100, %p101
    %p104 = scmp.ne.s32.totalorder %s89, %s103
    %p105 = scmp.eq.s32.totalorder %s16, 0
    %p106 = por %p104, %p105
    %s107 = ssub.s32 %s10, %s17
    %p108 = scmp.eq.s32.totalorder %s107, 0
    %s110 = sadd.s32 %s109, 1
    %s111 = scalar_select %p108, %s109, %s110
    %p114 = pneg %p108
    %p115 = scmp.eq.s32.totalorder %s10, 1
    %p116 = por %p114, %p115
    %p117 = scmp.ne.s32.totalorder %s109, %s112
    %p118 = scmp.eq.s32.totalorder %s10, 0
    %p119 = por %p117, %p118
    %p120 = scmp.ne.s32.totalorder %s109, %s112
    %p121 = scmp.eq.s32.totalorder %s15, 1
    %p122 = por %p120, %p121
    %p123 = scmp.ne.s32.totalorder %s112, %s113
    %p124 = scmp.eq.s32.totalorder %s15, 0
    %p125 = por %p123, %p124
    %p126 = scmp.ne.s32.totalorder %s112, %s113
    %p127 = scmp.eq.s32.totalorder %s16, 1
    %p128 = por %p126, %p127
    %p130 = scmp.ne.s32.totalorder %s113, %s129
    %p131 = scmp.eq.s32.totalorder %s16, 0
    %p132 = por %p130, %p131
    %p133 = scmp.le.s32.totalorder 1, %s10
    %p134 = scmp.lt.s32.totalorder %s10, 3
    %p135 = pnand %p133, %p134
    %p136 = pneg %p135
    // Predicated region
    $region9: #{unet_innermost_forward.1} parent=5 // pred_check
      _
    $region10: #{unet_innermost_forward.1} parent=5 // pred_check_branch
      %138 = sbr.rel (%p135) target = $region12
    $region11: #{unet_innermost_forward.1} parent=5 // pred_region
      %s139 = ssub.s32 %s10, 1
      // Predicated region
      $region13: #{unet_innermost_forward.1} parent=11 // pred_check
        %p140 = pneg %p57
      $region14: #{unet_innermost_forward.1} parent=11 // pred_check_branch
        %142 = sbr.rel (%p140) target = $region16
      $region15: #{unet_innermost_forward.1} parent=11 // pred_region
        _
      $region16: #{unet_innermost_forward.1} parent=11 // pred_fallthru
        _
      // Predicated region
      $region17: #{unet_innermost_forward.1} parent=11 // pred_check
        %p143 = pneg %p78
      $region18: #{unet_innermost_forward.1} parent=11 // pred_check_branch
        %145 = sbr.rel (%p143) target = $region20
      $region19: #{unet_innermost_forward.1} parent=11 // pred_region
        _
      $region20: #{unet_innermost_forward.1} parent=11 // pred_fallthru
        _
      // Predicated region
      $region21: #{unet_innermost_forward.1} parent=11 // pred_check
        %p146 = pneg %p99
      $region22: #{unet_innermost_forward.1} parent=11 // pred_check_branch
        %148 = sbr.rel (%p146) target = $region24
      $region23: #{unet_innermost_forward.1} parent=11 // pred_region
        _
      $region24: #{unet_innermost_forward.1} parent=11 // pred_fallthru
        _
    $region12: #{unet_innermost_forward.1} parent=5 // pred_fallthru
      _
    %p149 = scmp.lt.s32.totalorder %s10, 2
    // Predicated region
    $region25: #{unet_innermost_forward.1} parent=5 // pred_check
      %p150 = pneg %p149
    $region26: #{unet_innermost_forward.1} parent=5 // pred_check_branch
      %152 = sbr.rel (%p150) target = $region28
    $region27: #{unet_innermost_forward.1} parent=5 // pred_region
      // Predicated region
      $region29: #{unet_innermost_forward.1} parent=27 // pred_check
        %p153 = pneg %p30
      $region30: #{unet_innermost_forward.1} parent=27 // pred_check_branch
        %155 = sbr.rel (%p153) target = $region32
      $region31: #{unet_innermost_forward.1} parent=27 // pred_region
        %p156 = scmp.lt.s32.totalorder %s10, 1
        %s157 = scalar_select %p156, %s10, 1
        %s158 = smul.addr %s157, 12
        %s159 = smul.addr %s158, 2
        %s160 = scalar_lea.vmem %s0, %s159
      $region32: #{unet_innermost_forward.1} parent=27 // pred_fallthru
        _
    $region28: #{unet_innermost_forward.1} parent=5 // pred_fallthru
      _
    %p161 = scmp.le.s32.totalorder 1, %s10
    %p162 = scmp.lt.s32.totalorder %s10, 3
    %p163 = pnand %p161, %p162
    %p164 = pneg %p163
    // Predicated region
    $region33: #{unet_innermost_forward.1} parent=5 // pred_check
      _
    $region34: #{unet_innermost_forward.1} parent=5 // pred_check_branch
      %166 = sbr.rel (%p163) target = $region36
    $region35: #{unet_innermost_forward.1} parent=5 // pred_region
      %s167 = ssub.s32 %s10, 1
      %p168 = scmp.lt.s32.totalorder %s15, 1
      %s169 = scalar_select %p168, %s15, 1
      %s170 = smul.addr %s169, 12
      %s171 = smul.addr %s170, 2
      %s172 = scalar_lea.vmem %s0, %s171
      %p173 = pneg %p36
      %p174 = pneg %p33
      %p175 = pneg %p57
      %p176 = pneg %p54
      %p177 = pneg %p78
      %p178 = pneg %p75
      %p179 = pneg %p99
      %p180 = pneg %p96
      %p181 = pneg %p125
      %p182 = pneg %p122
      %p183 = scmp.lt.s32.totalorder %s15, 1
      %s184 = scalar_select %p183, %s15, 1
      %s185 = smul.addr %s184, 4
      %s186 = smul.addr %s185, 4
      %s187 = scalar_lea.vmem %s4, %s186
      %p188 = scmp.lt.s32.totalorder %s15, 1
      %s189 = scalar_select %p188, %s15, 1
      %s190 = smul.addr %s189, 12
      %s191 = smul.addr %s190, 2
      %s192 = scalar_lea.vmem %s0, %s191
      %p193 = scmp.lt.s32.totalorder %s15, 1
      %s194 = scalar_select %p193, %s15, 1
      %s195 = smul.addr %s194, 4
      %s196 = smul.addr %s195, 4
      %s197 = scalar_lea.vmem %s4, %s196
      %v200 = vld [vmem:[%s192] sm:$0x3f]
      %vm201 = vcmp.gt.bf16.partialorder %v200, 0
      %v202 = vmul.bf16 %v200, 1045249613
      %v203 = vsel %vm201, %v200, %v202
      %s204 = scalar_lea.vmem %s192, 6
      %v205 = vld [vmem:[%s204] sm:$0x3f]
      %vm206 = vcmp.gt.bf16.partialorder %v205, 0
      %v207 = vmul.bf16 %v205, 1045249613
      %v208 = vsel %vm206, %v205, %v207
      %s209 = scalar_lea.vmem %s192, 12
      %v210 = vld [vmem:[%s209] sm:$0x3f]
      %vm211 = vcmp.gt.bf16.partialorder %v210, 0
      %v212 = vmul.bf16 %v210, 1045249613
      %v213 = vsel %vm211, %v210, %v212
      %s214 = scalar_lea.vmem %s192, 18
      %v215 = vld [vmem:[%s214] sm:$0x3f]
      %vm216 = vcmp.gt.bf16.partialorder %v215, 0
      %v217 = vmul.bf16 %v215, 1045249613
      %v218 = vsel %vm216, %v215, %v217
      %v221 = vunpack.c.l.s4 1983009808
      %v222 = vunpack.c.0.s8 %v221
      %v223 = vlaneseq
      %v224 = vshrl.u32 %v223, 7
      %v225 = vsub.s32 %v222, %v224
      %v226 = vrot.slane %v203, %v225
      %v227 = vcombine.high %v226, %v226
      %v228 = vcombine.low %v203, %v203
      %v230 = vunpack.c.l.s4 1983009808
      %v231 = vunpack.c.0.s8 %v230
      %v232 = vlaneseq
      %v233 = vshrl.u32 %v232, 7
      %v234 = vsub.s32 %v231, %v233
      %v235 = vrot.slane %v228, %v234
      %v236 = vcombine.high %v235, %v235
      %237 = vrot.lane.b32.xlu0 %v235, 127
      %v238 = vpop.permute.xlu0 %237
      %239 = vrot.lane.b32.xlu0 %v236, 127
      %v240 = vpop.permute.xlu0 %239
      %241 = vrot.lane.b32.xlu0 %v226, 127
      %v242 = vpop.permute.xlu0 %241
      %vm243 = vcmask 1039360
      %v244 = vsel %vm243, %v238, %v240
      %v245 = vsel %vm243, %v240, %v242
      %v246 = vcombine.high %v203, %v203
      %v248 = vunpack.c.l.s4 1983009808
      %v249 = vunpack.c.0.s8 %v248
      %v250 = vlaneseq
      %v251 = vshrl.u32 %v250, 7
      %v252 = vsub.s32 %v249, %v251
      %v253 = vrot.slane %v246, %v252
      %v254 = vcombine.low %v226, %v226
      %v255 = vcombine.low %v253, %v253
      %256 = vrot.lane.b32.xlu0 %v254, 118
      %v257 = vpop.permute.xlu0 %256
      %258 = vrot.lane.b32.xlu0 %v226, 118
      %v259 = vpop.permute.xlu0 %258
      %260 = vrot.lane.b32.xlu0 %v255, 118
      %v261 = vpop.permute.xlu0 %260
      %vm262 = vcmask 965632
      %v263 = vsel %vm262, %v257, %v259
      %v264 = vsel %vm262, %v259, %v261
      %v265 = vcombine.low %v235, %v235
      %266 = vrot.lane.b32.xlu0 %v265, 117
      %v267 = vpop.permute.xlu0 %266
      %268 = vrot.lane.b32.xlu0 %v235, 117
      %v269 = vpop.permute.xlu0 %268
      %270 = vrot.lane.b32.xlu0 %v254, 117
      %v271 = vpop.permute.xlu0 %270
      %vm272 = vcmask 957440
      %v273 = vsel %vm272, %v267, %v269
      %v274 = vsel %vm272, %v269, %v271
      %v277 = vunpack.c.l.s4 1983009808
      %v278 = vunpack.c.0.s8 %v277
      %v279 = vlaneseq
      %v280 = vshrl.u32 %v279, 7
      %v281 = vsub.s32 %v278, %v280
      %v282 = vrot.slane %v208, %v281
      %v283 = vcombine.high %v282, %v282
      %v284 = vcombine.low %v208, %v208
      %v286 = vunpack.c.l.s4 1983009808
      %v287 = vunpack.c.0.s8 %v286
      %v288 = vlaneseq
      %v289 = vshrl.u32 %v288, 7
      %v290 = vsub.s32 %v287, %v289
      %v291 = vrot.slane %v284, %v290
      %v292 = vcombine.high %v291, %v291
      %293 = vrot.lane.b32.xlu0 %v291, 127
      %v294 = vpop.permute.xlu0 %293
      %295 = vrot.lane.b32.xlu0 %v292, 127
      %v296 = vpop.permute.xlu0 %295
      %297 = vrot.lane.b32.xlu0 %v282, 127
      %v298 = vpop.permute.xlu0 %297
      %v299 = vsel %vm243, %v294, %v296
      %v300 = vsel %vm243, %v296, %v298
      %v301 = vcombine.high %v208, %v208
      %v303 = vunpack.c.l.s4 1983009808
      %v304 = vunpack.c.0.s8 %v303
      %v305 = vlaneseq
      %v306 = vshrl.u32 %v305, 7
      %v307 = vsub.s32 %v304, %v306
      %v308 = vrot.slane %v301, %v307
      %v309 = vcombine.low %v282, %v282
      %v310 = vcombine.low %v308, %v308
      %311 = vrot.lane.b32.xlu0 %v309, 118
      %v312 = vpop.permute.xlu0 %311
      %313 = vrot.lane.b32.xlu0 %v282, 118
      %v314 = vpop.permute.xlu0 %313
      %315 = vrot.lane.b32.xlu0 %v310, 118
      %v316 = vpop.permute.xlu0 %315
      %v317 = vsel %vm262, %v312, %v314
      %v318 = vsel %vm262, %v314, %v316
      %v319 = vcombine.low %v291, %v291
      %320 = vrot.lane.b32.xlu0 %v319, 117
      %v321 = vpop.permute.xlu0 %320
      %322 = vrot.lane.b32.xlu0 %v291, 117
      %v323 = vpop.permute.xlu0 %322
      %324 = vrot.lane.b32.xlu0 %v309, 117
      %v325 = vpop.permute.xlu0 %324
      %v326 = vsel %vm272, %v321, %v323
      %v327 = vsel %vm272, %v323, %v325
      %v330 = vunpack.c.l.s4 1983009808
      %v331 = vunpack.c.0.s8 %v330
      %v332 = vlaneseq
      %v333 = vshrl.u32 %v332, 7
      %v334 = vsub.s32 %v331, %v333
      %v335 = vrot.slane %v213, %v334
      %v336 = vcombine.high %v335, %v335
      %v337 = vcombine.low %v213, %v213
      %v339 = vunpack.c.l.s4 1983009808
      %v340 = vunpack.c.0.s8 %v339
      %v341 = vlaneseq
      %v342 = vshrl.u32 %v341, 7
      %v343 = vsub.s32 %v340, %v342
      %v344 = vrot.slane %v337, %v343
      %v345 = vcombine.high %v344, %v344
      %346 = vrot.lane.b32.xlu0 %v344, 127
      %v347 = vpop.permute.xlu0 %346
      %348 = vrot.lane.b32.xlu0 %v345, 127
      %v349 = vpop.permute.xlu0 %348
      %350 = vrot.lane.b32.xlu0 %v335, 127
      %v351 = vpop.permute.xlu0 %350
      %v352 = vsel %vm243, %v347, %v349
      %v353 = vsel %vm243, %v349, %v351
      %v354 = vcombine.high %v213, %v213
      %v356 = vunpack.c.l.s4 1983009808
      %v357 = vunpack.c.0.s8 %v356
      %v358 = vlaneseq
      %v359 = vshrl.u32 %v358, 7
      %v360 = vsub.s32 %v357, %v359
      %v361 = vrot.slane %v354, %v360
      %v362 = vcombine.low %v335, %v335
      %v363 = vcombine.low %v361, %v361
      %364 = vrot.lane.b32.xlu0 %v362, 118
      %v365 = vpop.permute.xlu0 %364
      %366 = vrot.lane.b32.xlu0 %v335, 118
      %v367 = vpop.permute.xlu0 %366
      %368 = vrot.lane.b32.xlu0 %v363, 118
      %v369 = vpop.permute.xlu0 %368
      %v370 = vsel %vm262, %v365, %v367
      %v371 = vsel %vm262, %v367, %v369
      %v372 = vcombine.low %v344, %v344
      %373 = vrot.lane.b32.xlu0 %v372, 117
      %v374 = vpop.permute.xlu0 %373
      %375 = vrot.lane.b32.xlu0 %v344, 117
      %v376 = vpop.permute.xlu0 %375
      %377 = vrot.lane.b32.xlu0 %v362, 117
      %v378 = vpop.permute.xlu0 %377
      %v379 = vsel %vm272, %v374, %v376
      %v380 = vsel %vm272, %v376, %v378
      %v383 = vunpack.c.l.s4 1983009808
      %v384 = vunpack.c.0.s8 %v383
      %v385 = vlaneseq
      %v386 = vshrl.u32 %v385, 7
      %v387 = vsub.s32 %v384, %v386
      %v388 = vrot.slane %v218, %v387
      %v389 = vcombine.high %v388, %v388
      %v390 = vcombine.low %v218, %v218
      %v392 = vunpack.c.l.s4 1983009808
      %v393 = vunpack.c.0.s8 %v392
      %v394 = vlaneseq
      %v395 = vshrl.u32 %v394, 7
      %v396 = vsub.s32 %v393, %v395
      %v397 = vrot.slane %v390, %v396
      %v398 = vcombine.high %v397, %v397
      %399 = vrot.lane.b32.xlu0 %v397, 127
      %v400 = vpop.permute.xlu0 %399
      %401 = vrot.lane.b32.xlu0 %v398, 127
      %v402 = vpop.permute.xlu0 %401
      %403 = vrot.lane.b32.xlu0 %v388, 127
      %v404 = vpop.permute.xlu0 %403
      %v405 = vsel %vm243, %v400, %v402
      %v406 = vsel %vm243, %v402, %v404
      %v407 = vcombine.high %v218, %v218
      %v409 = vunpack.c.l.s4 1983009808
      %v410 = vunpack.c.0.s8 %v409
      %v411 = vlaneseq
      %v412 = vshrl.u32 %v411, 7
      %v413 = vsub.s32 %v410, %v412
      %v414 = vrot.slane %v407, %v413
      %v415 = vcombine.low %v388, %v388
      %v416 = vcombine.low %v414, %v414
      %417 = vrot.lane.b32.xlu0 %v415, 118
      %v418 = vpop.permute.xlu0 %417
      %419 = vrot.lane.b32.xlu0 %v388, 118
      %v420 = vpop.permute.xlu0 %419
      %421 = vrot.lane.b32.xlu0 %v416, 118
      %v422 = vpop.permute.xlu0 %421
      %v423 = vsel %vm262, %v418, %v420
      %v424 = vsel %vm262, %v420, %v422
      %v425 = vcombine.low %v397, %v397
      %426 = vrot.lane.b32.xlu0 %v425, 117
      %v427 = vpop.permute.xlu0 %426
      %428 = vrot.lane.b32.xlu0 %v397, 117
      %v429 = vpop.permute.xlu0 %428
      %430 = vrot.lane.b32.xlu0 %v415, 117
      %v431 = vpop.permute.xlu0 %430
      %v432 = vsel %vm272, %v427, %v429
      %v433 = vsel %vm272, %v429, %v431
      %vm434 = vcmask 1041408
      %v437 = vsel %vm434, %v226, %v244
      %v440 = vsel %vm434, %v227, %v245
      %vm441 = vcmask 1043456
      %v443 = vsel %vm441, %v437, %v263
      %v445 = vsel %vm441, %v440, %v264
      %vm446 = vcmask 1045504
      %v448 = vsel %vm446, %v443, %v273
      %v451 = vsel %vm446, %v445, %v274
      %v455 = vsel %vm434, %v282, %v299
      %v458 = vsel %vm434, %v283, %v300
      %v460 = vsel %vm441, %v455, %v317
      %v462 = vsel %vm441, %v458, %v318
      %v464 = vsel %vm446, %v460, %v326
      %v467 = vsel %vm446, %v462, %v327
      %v471 = vsel %vm434, %v335, %v352
      %v474 = vsel %vm434, %v336, %v353
      %v476 = vsel %vm441, %v471, %v370
      %v478 = vsel %vm441, %v474, %v371
      %v480 = vsel %vm446, %v476, %v379
      %v483 = vsel %vm446, %v478, %v380
      %v487 = vsel %vm434, %v388, %v405
      %v490 = vsel %vm434, %v389, %v406
      %v492 = vsel %vm441, %v487, %v423
      %v494 = vsel %vm441, %v490, %v424
      %v496 = vsel %vm446, %v492, %v432
      %v499 = vsel %vm446, %v494, %v433
      %v501 = vld [vmem:[%s1] sm:$0xf]
      %vm502 = vcmask 523264
      %v504 = vsel %vm502, %v501, 0
      %506 = vmatprep.subr.bf16.mxu0 0
      %507 = vmatpush1.bf16.msra.mxu0 0
      %508 = vmatprep.subr.bf16.mxu0 0
      %509 = vmatpush1.bf16.msra.mxu0 0
      %510 = vmatprep.subr.bf16.mxu0 0
      %511 = vmatpush1.bf16.msra.mxu0 0
      %512 = vmatprep.subr.bf16.mxu0 0
      %513 = vmatpush1.bf16.msra.mxu0 0
      %514 = vmatprep.subr.bf16.mxu0 %v499
      %515 = vmatpush1.bf16.msra.mxu0 %v496
      %516 = vmatprep.subr.bf16.mxu0 %v483
      %517 = vmatpush1.bf16.msra.mxu0 %v480
      %518 = vmatprep.subr.bf16.mxu0 %v467
      %519 = vmatpush1.bf16.msra.mxu0 %v464
      %520 = vmatprep.subr.bf16.mxu0 %v451
      %521 = vmatpush1.bf16.msra.mxu0 %v448
      %522 = vmatprep.subr.bf16.mxu0 0
      %523 = vmatpush2.bf16.msra.mxu0 0
      %524 = vmatprep.subr.bf16.mxu0 0
      %525 = vmatpush2.bf16.msra.mxu0 0
      %526 = vmatprep.subr.bf16.mxu0 0
      %527 = vmatpush2.bf16.msra.mxu0 0
      %528 = vmatprep.subr.bf16.mxu0 0
      %529 = vmatpush2.bf16.msra.mxu0 0
      %530 = vmatprep.subr.bf16.mxu0 0
      %531 = vmatpush2.bf16.msra.mxu0 0
      %532 = vmatprep.subr.bf16.mxu0 0
      %533 = vmatpush2.bf16.msra.mxu0 0
      %534 = vmatprep.subr.bf16.mxu0 0
      %535 = vmatpush2.bf16.msra.mxu0 0
      %536 = vmatprep.subr.bf16.mxu0 0
      %537 = vmatpush2.bf16.msra.mxu0 0
      %538 = vmatprep.mubr.bf16.mxu0 0
      %539 = vmatmul.mubr.bf16.gmra.mxu0 %v504
      %v540 = vpop.f32.mrf.mxu0
      %v541 = vadd.f32 0.0, %v540
      %v542 = vpop.f32.mrf.mxu0
      %v543 = vadd.f32 0.0, %v542
      %v544 = vpop.f32.mrf.mxu0
      %v545 = vpop.f32.mrf.mxu0
      %546 = vdwg.mxu0
      %vm547 = vcmp.gt.f32.partialorder %v541, 0.0
      %vm548 = vcmp.gt.f32.partialorder %v543, 0.0
      %v549 = vmul.f32 %v541, 0.2
      %v550 = vmul.f32 %v543, 0.2
      %v551 = vsel %vm547, %v541, %v549
      %v552 = vsel %vm548, %v543, %v550
      %v553 = vld [vmem:[%s3] sm:$0x3]
      %v555 = vlaneseq
      %v556 = vshrl.u32 %v555, 7
      %v557 = vsub.s32 0, %v556
      %v558 = vrot.slane %v553, %v557
      %v559 = vlaneseq
      %v560 = vshrl.u32 %v559, 7
      %v561 = vsub.s32 1, %v560
      %v562 = vrot.slane %v553, %v561
      %v565 = vmul.f32 %v551, %v558
      %v566 = vmul.f32 %v552, %v562
      %v567 = vpack.c.bf16 %v565, %v565
      %v568 = vpack.c.bf16 %v566, %v566
      %v571 = vrot.slane %v567, 4
      %v572 = vrot.slane %v568, 4
      %573 = vrot.lane.b32.xlu0 %v571, 127
      %v574 = vpop.permute.xlu0 %573
      %575 = vrot.lane.b32.xlu0 %v572, 127
      %v576 = vpop.permute.xlu0 %575
      %v577 = vsel %vm243, %v574, %v576
      %578 = vrot.lane.b32.xlu0 %v567, 118
      %v579 = vpop.permute.xlu0 %578
      %580 = vrot.lane.b32.xlu0 %v568, 118
      %v581 = vpop.permute.xlu0 %580
      %v582 = vsel %vm262, %v579, %v581
      %583 = vrot.lane.b32.xlu0 %v571, 117
      %v584 = vpop.permute.xlu0 %583
      %585 = vrot.lane.b32.xlu0 %v572, 117
      %v586 = vpop.permute.xlu0 %585
      %v587 = vsel %vm272, %v584, %v586
      %v590 = vsel %vm441, %v567, %v577
      %v594 = vsel %vm441, %v582, %v587
      %v596 = vld [vmem:[%s2] sm:$0x3]
      %vm597 = vcmask 261120
      %v599 = vsel %vm597, %v596, 0
      %601 = vmatprep.subr.bf16.mxu0 0
      %602 = vmatpush1.bf16.msra.mxu0 0
      %603 = vmatprep.subr.bf16.mxu0 0
      %604 = vmatpush1.bf16.msra.mxu0 0
      %605 = vmatprep.subr.bf16.mxu0 0
      %606 = vmatpush1.bf16.msra.mxu0 0
      %607 = vmatprep.subr.bf16.mxu0 0
      %608 = vmatpush1.bf16.msra.mxu0 0
      %609 = vmatprep.subr.bf16.mxu0 0
      %610 = vmatpush1.bf16.msra.mxu0 0
      %611 = vmatprep.subr.bf16.mxu0 0
      %612 = vmatpush1.bf16.msra.mxu0 0
      %613 = vmatprep.subr.bf16.mxu0 0
      %614 = vmatpush1.bf16.msra.mxu0 %v594
      %615 = vmatprep.subr.bf16.mxu0 0
      %616 = vmatpush1.bf16.msra.mxu0 %v590
      %617 = vmatprep.subr.bf16.mxu0 0
      %618 = vmatpush2.bf16.msra.mxu0 0
      %619 = vmatprep.subr.bf16.mxu0 0
      %620 = vmatpush2.bf16.msra.mxu0 0
      %621 = vmatprep.subr.bf16.mxu0 0
      %622 = vmatpush2.bf16.msra.mxu0 0
      %623 = vmatprep.subr.bf16.mxu0 0
      %624 = vmatpush2.bf16.msra.mxu0 0
      %625 = vmatprep.subr.bf16.mxu0 0
      %626 = vmatpush2.bf16.msra.mxu0 0
      %627 = vmatprep.subr.bf16.mxu0 0
      %628 = vmatpush2.bf16.msra.mxu0 0
      %629 = vmatprep.subr.bf16.mxu0 0
      %630 = vmatpush2.bf16.msra.mxu0 0
      %631 = vmatprep.subr.bf16.mxu0 0
      %632 = vmatpush2.bf16.msra.mxu0 0
      %633 = vmatprep.mubr.bf16.mxu0 0
      %634 = vmatmul.mubr.bf16.gmra.mxu0 %v599
      %v635 = vpop.f32.mrf.mxu0
      %v636 = vadd.f32 0.0, %v635
      %v637 = vpop.f32.mrf.mxu0
      %v638 = vpop.f32.mrf.mxu0
      %v639 = vpop.f32.mrf.mxu0
      %640 = vdwg.mxu0
      %641 = vst [vmem:[%s197] sm:$0xf] %v636
      %v644 = vsel %vm441, %v568, %v576
      %v647 = vsel %vm441, %v581, %v586
      %s648 = scalar_lea.vmem %s2, 2
      %v649 = vld [vmem:[%s648] sm:$0x3]
      %654 = vrot.lane.b32.xlu0 %v590, 127
      %v655 = vpop.permute.xlu0 %654
      %656 = vrot.lane.b32.xlu0 %v644, 127
      %v657 = vpop.permute.xlu0 %656
      %658 = vrot.lane.b32.xlu0 %v594, 127
      %v659 = vpop.permute.xlu0 %658
      %660 = vrot.lane.b32.xlu0 %v647, 127
      %v661 = vpop.permute.xlu0 %660
      %v662 = vsel %vm243, %v655, %v657
      %v663 = vsel %vm243, %v659, %v661
      %v667 = vsel %vm597, %v649, 0
      %669 = vmatprep.subr.bf16.mxu0 0
      %670 = vmatpush1.bf16.msra.mxu0 0
      %671 = vmatprep.subr.bf16.mxu0 0
      %672 = vmatpush1.bf16.msra.mxu0 0
      %673 = vmatprep.subr.bf16.mxu0 0
      %674 = vmatpush1.bf16.msra.mxu0 0
      %675 = vmatprep.subr.bf16.mxu0 0
      %676 = vmatpush1.bf16.msra.mxu0 0
      %677 = vmatprep.subr.bf16.mxu0 0
      %678 = vmatpush1.bf16.msra.mxu0 0
      %679 = vmatprep.subr.bf16.mxu0 0
      %680 = vmatpush1.bf16.msra.mxu0 0
      %681 = vmatprep.subr.bf16.mxu0 0
      %682 = vmatpush1.bf16.msra.mxu0 %v663
      %683 = vmatprep.subr.bf16.mxu0 0
      %684 = vmatpush1.bf16.msra.mxu0 %v662
      %685 = vmatprep.subr.bf16.mxu0 0
      %686 = vmatpush2.bf16.msra.mxu0 0
      %687 = vmatprep.subr.bf16.mxu0 0
      %688 = vmatpush2.bf16.msra.mxu0 0
      %689 = vmatprep.subr.bf16.mxu0 0
      %690 = vmatpush2.bf16.msra.mxu0 0
      %691 = vmatprep.subr.bf16.mxu0 0
      %692 = vmatpush2.bf16.msra.mxu0 0
      %693 = vmatprep.subr.bf16.mxu0 0
      %694 = vmatpush2.bf16.msra.mxu0 0
      %695 = vmatprep.subr.bf16.mxu0 0
      %696 = vmatpush2.bf16.msra.mxu0 0
      %697 = vmatprep.subr.bf16.mxu0 0
      %698 = vmatpush2.bf16.msra.mxu0 0
      %699 = vmatprep.subr.bf16.mxu0 0
      %700 = vmatpush2.bf16.msra.mxu0 0
      %701 = vmatprep.mubr.bf16.mxu0 0
      %702 = vmatmul.mubr.bf16.gmra.mxu0 %v667
      %v703 = vpop.f32.mrf.mxu0
      %v704 = vadd.f32 0.0, %v703
      %v705 = vpop.f32.mrf.mxu0
      %v706 = vpop.f32.mrf.mxu0
      %v707 = vpop.f32.mrf.mxu0
      %708 = vdwg.mxu0
      %s709 = scalar_lea.vmem %s197, 4
      %710 = vst [vmem:[%s709] sm:$0xf] %v704
      %s711 = scalar_lea.vmem %s2, 4
      %v712 = vld [vmem:[%s711] sm:$0x3]
      %713 = vrot.lane.b32.xlu0 %v590, 118
      %v714 = vpop.permute.xlu0 %713
      %715 = vrot.lane.b32.xlu0 %v644, 118
      %v716 = vpop.permute.xlu0 %715
      %717 = vrot.lane.b32.xlu0 %v594, 118
      %v718 = vpop.permute.xlu0 %717
      %719 = vrot.lane.b32.xlu0 %v647, 118
      %v720 = vpop.permute.xlu0 %719
      %v721 = vsel %vm262, %v714, %v716
      %v722 = vsel %vm262, %v718, %v720
      %v726 = vsel %vm597, %v712, 0
      %728 = vmatprep.subr.bf16.mxu0 0
      %729 = vmatpush1.bf16.msra.mxu0 0
      %730 = vmatprep.subr.bf16.mxu0 0
      %731 = vmatpush1.bf16.msra.mxu0 0
      %732 = vmatprep.subr.bf16.mxu0 0
      %733 = vmatpush1.bf16.msra.mxu0 0
      %734 = vmatprep.subr.bf16.mxu0 0
      %735 = vmatpush1.bf16.msra.mxu0 0
      %736 = vmatprep.subr.bf16.mxu0 0
      %737 = vmatpush1.bf16.msra.mxu0 0
      %738 = vmatprep.subr.bf16.mxu0 0
      %739 = vmatpush1.bf16.msra.mxu0 0
      %740 = vmatprep.subr.bf16.mxu0 0
      %741 = vmatpush1.bf16.msra.mxu0 %v722
      %742 = vmatprep.subr.bf16.mxu0 0
      %743 = vmatpush1.bf16.msra.mxu0 %v721
      %744 = vmatprep.subr.bf16.mxu0 0
      %745 = vmatpush2.bf16.msra.mxu0 0
      %746 = vmatprep.subr.bf16.mxu0 0
      %747 = vmatpush2.bf16.msra.mxu0 0
      %748 = vmatprep.subr.bf16.mxu0 0
      %749 = vmatpush2.bf16.msra.mxu0 0
      %750 = vmatprep.subr.bf16.mxu0 0
      %751 = vmatpush2.bf16.msra.mxu0 0
      %752 = vmatprep.subr.bf16.mxu0 0
      %753 = vmatpush2.bf16.msra.mxu0 0
      %754 = vmatprep.subr.bf16.mxu0 0
      %755 = vmatpush2.bf16.msra.mxu0 0
      %756 = vmatprep.subr.bf16.mxu0 0
      %757 = vmatpush2.bf16.msra.mxu0 0
      %758 = vmatprep.subr.bf16.mxu0 0
      %759 = vmatpush2.bf16.msra.mxu0 0
      %760 = vmatprep.mubr.bf16.mxu0 0
      %761 = vmatmul.mubr.bf16.gmra.mxu0 %v726
      %v762 = vpop.f32.mrf.mxu0
      %v763 = vadd.f32 0.0, %v762
      %v764 = vpop.f32.mrf.mxu0
      %v765 = vpop.f32.mrf.mxu0
      %v766 = vpop.f32.mrf.mxu0
      %767 = vdwg.mxu0
      %s768 = scalar_lea.vmem %s197, 8
      %769 = vst [vmem:[%s768] sm:$0xf] %v763
      %s770 = scalar_lea.vmem %s2, 6
      %v771 = vld [vmem:[%s770] sm:$0x3]
      %772 = vrot.lane.b32.xlu0 %v590, 117
      %v773 = vpop.permute.xlu0 %772
      %774 = vrot.lane.b32.xlu0 %v644, 117
      %v775 = vpop.permute.xlu0 %774
      %776 = vrot.lane.b32.xlu0 %v594, 117
      %v777 = vpop.permute.xlu0 %776
      %778 = vrot.lane.b32.xlu0 %v647, 117
      %v779 = vpop.permute.xlu0 %778
      %v780 = vsel %vm272, %v773, %v775
      %v781 = vsel %vm272, %v777, %v779
      %v785 = vsel %vm597, %v771, 0
      %787 = vmatprep.subr.bf16.mxu0 0
      %788 = vmatpush1.bf16.msra.mxu0 0
      %789 = vmatprep.subr.bf16.mxu0 0
      %790 = vmatpush1.bf16.msra.mxu0 0
      %791 = vmatprep.subr.bf16.mxu0 0
      %792 = vmatpush1.bf16.msra.mxu0 0
      %793 = vmatprep.subr.bf16.mxu0 0
      %794 = vmatpush1.bf16.msra.mxu0 0
      %795 = vmatprep.subr.bf16.mxu0 0
      %796 = vmatpush1.bf16.msra.mxu0 0
      %797 = vmatprep.subr.bf16.mxu0 0
      %798 = vmatpush1.bf16.msra.mxu0 0
      %799 = vmatprep.subr.bf16.mxu0 0
      %800 = vmatpush1.bf16.msra.mxu0 %v781
      %801 = vmatprep.subr.bf16.mxu0 0
      %802 = vmatpush1.bf16.msra.mxu0 %v780
      %803 = vmatprep.subr.bf16.mxu0 0
      %804 = vmatpush2.bf16.msra.mxu0 0
      %805 = vmatprep.subr.bf16.mxu0 0
      %806 = vmatpush2.bf16.msra.mxu0 0
      %807 = vmatprep.subr.bf16.mxu0 0
      %808 = vmatpush2.bf16.msra.mxu0 0
      %809 = vmatprep.subr.bf16.mxu0 0
      %810 = vmatpush2.bf16.msra.mxu0 0
      %811 = vmatprep.subr.bf16.mxu0 0
      %812 = vmatpush2.bf16.msra.mxu0 0
      %813 = vmatprep.subr.bf16.mxu0 0
      %814 = vmatpush2.bf16.msra.mxu0 0
      %815 = vmatprep.subr.bf16.mxu0 0
      %816 = vmatpush2.bf16.msra.mxu0 0
      %817 = vmatprep.subr.bf16.mxu0 0
      %818 = vmatpush2.bf16.msra.mxu0 0
      %819 = vmatprep.mubr.bf16.mxu0 0
      %820 = vmatmul.mubr.bf16.gmra.mxu0 %v785
      %v821 = vpop.f32.mrf.mxu0
      %v822 = vadd.f32 0.0, %v821
      %v823 = vpop.f32.mrf.mxu0
      %v824 = vpop.f32.mrf.mxu0
      %v825 = vpop.f32.mrf.mxu0
      %826 = vdwg.mxu0
      %s827 = scalar_lea.vmem %s197, 12
      %828 = vst [vmem:[%s827] sm:$0xf] %v822
      %p829 = scmp.lt.s32.totalorder %s15, 1
      %s830 = scalar_select %p829, %s15, 1
      %s831 = smul.addr %s830, 4
      %s832 = smul.addr %s831, 4
      %s833 = scalar_lea.vmem %s4, %s832
      // Predicated region
      $region37: #{unet_innermost_forward.1} parent=35 // pred_check
        %p834 = pneg %p122
      $region38: #{unet_innermost_forward.1} parent=35 // pred_check_branch
        %836 = sbr.rel (%p834) target = $region40
      $region39: #{unet_innermost_forward.1} parent=35 // pred_region
        _
      $region40: #{unet_innermost_forward.1} parent=35 // pred_fallthru
        _
    $region36: #{unet_innermost_forward.1} parent=5 // pred_fallthru
      _
    %p837 = scmp.le.s32.totalorder 2, %s10
    // Predicated region
    $region41: #{unet_innermost_forward.1} parent=5 // pred_check
      %p838 = pneg %p837
    $region42: #{unet_innermost_forward.1} parent=5 // pred_check_branch
      %840 = sbr.rel (%p838) target = $region44
    $region43: #{unet_innermost_forward.1} parent=5 // pred_region
      %s841 = ssub.s32 %s10, 2
      // Predicated region
      $region45: #{unet_innermost_forward.1} parent=43 // pred_check
        %p842 = pneg %p128
      $region46: #{unet_innermost_forward.1} parent=43 // pred_check_branch
        %844 = sbr.rel (%p842) target = $region48
      $region47: #{unet_innermost_forward.1} parent=43 // pred_region
        %p845 = scmp.lt.s32.totalorder %s16, 1
        %s846 = scalar_select %p845, %s16, 1
        %s847 = smul.addr %s846, 4
        %s848 = smul.addr %s847, 4
        %s849 = scalar_lea.vmem %s4, %s848
      $region48: #{unet_innermost_forward.1} parent=43 // pred_fallthru
        _
    $region44: #{unet_innermost_forward.1} parent=5 // pred_fallthru
      _
  $region6: #{unet_innermost_forward.1} parent=0 // loop_footer
    %s14 = sadd.s32 1, %s10
  $region7: #{unet_innermost_forward.1} parent=0 // loop_footer_branch
    %9 = sbr.rel target = $region3
  $region8: #{unet_innermost_forward.1} parent=0 // loop_exit
    _

</llo_original>
